<compile_context>
chip_gen: v5e
topology: v5e:2x2
jax: 0.10.0
libtpu: 0.0.40
codegen_flags: <defaults>
</compile_context>

<pallas_src>
import functools

import jax
import jax.numpy as jnp
from jax import lax
from jax.experimental import pallas as pl
from jax.experimental.pallas import tpu as pltpu


def _round_up(n: int, m: int) -> int:
    return ((n + m - 1) // m) * m


def _cdiv(a: int, b: int) -> int:
    return (a + b - 1) // b


def _gemv_kernel(x_ref, w_ref, b_ref, o_ref, acc_ref, *, valid_k, block_k,
                 mask_k_tail):
    k = pl.program_id(1)

    @pl.when(k == 0)
    def _init():
        acc_ref[...] = jnp.zeros_like(acc_ref)

    x = x_ref[...]                                   # (tb, tk)
    if mask_k_tail:
        # Partial last K block: columns >= K hold unspecified data (could be
        # NaN/Inf) -> zero them before the contraction.  All-true on non-tail
        # steps; cheap VPU work fully hidden under the multi-MiB x DMA.
        col = k * block_k + lax.broadcasted_iota(jnp.int32, x.shape, 1)
        x = jnp.where(col < valid_k, x, 0.0)

    w_row = w_ref[...]                               # (1, tk), zero-padded tail
    # MXU contraction (rhs transposed / "NT" dims): (tb,tk) . (1,tk)^T -> (tb,1)
    acc_ref[...] += lax.dot_general(
        x, w_row,
        dimension_numbers=(((1,), (1,)), ((), ())),
        preferred_element_type=jnp.float32,
    )

    @pl.when(k == pl.num_programs(1) - 1)
    def _finalize():
        o_ref[...] = (acc_ref[...] + b_ref[0, 0]).astype(o_ref.dtype)


def logistic_model_forward(x, w, b, *, tb_max=256, tk_max=8192):
    """Pallas equivalent of LogisticModel.forward: (x @ w + b).squeeze(-1).

    x: (B, input_dim), w: (input_dim, 1) (transposed nn.Linear weight), b: (1,).
    Returns (B,) logits in x.dtype (f32 in; for bf16 inputs the f32 accumulation
    is rounded at the final store).
    """
    B, K = x.shape
    dtype = x.dtype
    w_flat = jnp.reshape(w, (K,)).astype(dtype)
    b2 = jnp.reshape(b, (1, 1)).astype(jnp.float32)

    # ---- K tiling: padding bounded by <128 columns per K tile ----
    K128 = _round_up(K, 128)
    n_k = _cdiv(K128, tk_max)
    tk = _round_up(_cdiv(K, n_k), 128)
    K_pad = n_k * tk
    mask_k_tail = K_pad != K          # last K block is partial

    # ---- B tiling: multiples of 8 sublanes; aim for >=2 tiles (v7x dual-TC) ----
    if B > 8:
        tb = min(_round_up(_cdiv(B, 2), 8), tb_max)
    else:
        tb = 8
    n_b = _cdiv(B, tb)

    # Pad only the (tiny) weight; x goes in unpadded.
    w_p = jnp.pad(w_flat, (0, K_pad - K)).reshape(n_k, tk)

    kernel = functools.partial(_gemv_kernel, valid_k=K, block_k=tk,
                               mask_k_tail=mask_k_tail)

    # Explicit VMEM budget: double-buffered x + w blocks + small out/acc, with
    # headroom; capped well under v7x's 64 MiB physical VMEM.
    itemsize = jnp.dtype(dtype).itemsize
    need = 2 * (tb * tk * itemsize + 8 * tk * itemsize) + 4 * tb * 512
    vmem_limit = int(min(48 * 1024 * 1024,
                         max(32 * 1024 * 1024, need + 4 * 1024 * 1024)))

    out = pl.pallas_call(
        kernel,
        out_shape=jax.ShapeDtypeStruct((B, 1), dtype),
        grid_spec=pltpu.PrefetchScalarGridSpec(
            num_scalar_prefetch=0,
            grid=(n_b, n_k),                                   # K reduction innermost
            in_specs=[
                pl.BlockSpec((tb, tk), lambda i, k: (i, k)),            # x tile
                pl.BlockSpec((1, tk), lambda i, k: (k, 0)),             # w row
                pl.BlockSpec(memory_space=pltpu.MemorySpace.SMEM),      # bias
            ],
            out_specs=pl.BlockSpec((tb, 1), lambda i, k: (i, 0)),
            scratch_shapes=[pltpu.VMEM((tb, 1), jnp.float32)],
        ),
        compiler_params=pltpu.CompilerParams(
            dimension_semantics=("parallel", "arbitrary"),
            vmem_limit_bytes=vmem_limit,
        ),
    )(x, w_p, b2)

    return jnp.reshape(out, (B,))


if __name__ == "__main__":
    # Small analogue of the original script: input_dim = WINDOW_SIZE * D.
    B = 10
    WINDOW_SIZE = 600
    D = 1
    input_dim = WINDOW_SIZE * D   # 600 (not a multiple of 128; B not of 8)

    key = jax.random.PRNGKey(0)
    kx, kw, kb = jax.random.split(key, 3)

    # Integer-grid inputs (exactly representable at any MXU precision) so the
    # check validates tiling / K-tail masking / accumulation / bias exactly.
    x = jax.random.randint(kx, (B, input_dim), -8, 8).astype(jnp.float32) / 4.0
    w = jax.random.randint(kw, (input_dim, 1), -32, 32).astype(jnp.float32) / 128.0
    b = jax.random.randint(kb, (1,), -32, 32).astype(jnp.float32) / 128.0

    y_ref = (jnp.dot(x, w, precision=jax.lax.Precision.HIGHEST) + b).reshape(-1)

    # Default path: n_k = 1 (single full-K block), B split into two 8-row tiles.
    y1 = logistic_model_forward(x, w, b)
    jax.block_until_ready(y1)
    assert y1.shape == (B,)
    assert jnp.allclose(y1, y_ref, atol=1e-5, rtol=1e-5)

    # Small tk_max forces a 3-step K reduction + K-tail masking path.
    y2 = logistic_model_forward(x, w, b, tk_max=256)
    jax.block_until_ready(y2)
    assert jnp.allclose(y2, y_ref, atol=1e-5, rtol=1e-5)

    print("KERNEL_OK")
</pallas_src>

<mosaic_0001>
module attributes {stable_mosaic.version = 11 : i64} {
  func.func @_gemv_kernel(%arg0: i32, %arg1: i32, %arg2: memref<8x640xf32, #tpu.memory_space<vmem>>, %arg3: memref<1x640xf32, #tpu.memory_space<vmem>>, %arg4: memref<1x1xf32, #tpu.memory_space<smem>>, %arg5: memref<8x1xf32, #tpu.memory_space<vmem>>, %arg6: memref<8x1xf32, #tpu.memory_space<vmem>>) attributes {dimension_semantics = [#tpu.dimension_semantics<parallel>, #tpu.dimension_semantics<arbitrary>], iteration_bounds = array<i64: 2, 1>, scalar_prefetch = 0 : i64, scratch_operands = 1 : i64, tpu.core_type = #tpu.core_type<tc>, window_params = [{transform_indices = @transform_0, window_bounds = array<i64: 8, 640>}, {transform_indices = @transform_1, window_bounds = array<i64: 1, 640>}, {transform_indices = @transform_2, window_bounds = array<i64: 1, 1>}, {transform_indices = @transform_3, window_bounds = array<i64: 8, 1>}]} {
    %c0_i32 = arith.constant 0 : i32
    %0 = arith.cmpi eq, %arg1, %c0_i32 : i32
    %1 = arith.extui %0 : i1 to i32
    %c0_i32_0 = arith.constant 0 : i32
    %2 = arith.cmpi ne, %1, %c0_i32_0 : i32
    scf.if %2 {
      %cst_11 = arith.constant 0.000000e+00 : f32
      %20 = vector.broadcast %cst_11 : f32 to vector<8x1xf32>
      %c0_12 = arith.constant 0 : index
      %c0_13 = arith.constant 0 : index
      %21 = vector.load %arg6[%c0_12, %c0_13] : memref<8x1xf32, #tpu.memory_space<vmem>>, vector<8x1xf32>
      tpu.vector_store %arg6[%c0_12, %c0_13], %20 {strides = array<i32>} : memref<8x1xf32, #tpu.memory_space<vmem>>, vector<8x1xf32>,
    } else {
    }
    %c0 = arith.constant 0 : index
    %c0_1 = arith.constant 0 : index
    %3 = vector.load %arg2[%c0, %c0_1] : memref<8x640xf32, #tpu.memory_space<vmem>>, vector<8x640xf32>
    %c640_i32 = arith.constant 640 : i32
    %4 = arith.muli %arg1, %c640_i32 : i32
    %5 = tpu.iota {dimensions = array<i32: 1>} : vector<8x640xi32>
    %6 = vector.broadcast %4 : i32 to vector<8x640xi32>
    %7 = arith.addi %6, %5 : vector<8x640xi32>
    %c600_i32 = arith.constant 600 : i32
    %8 = vector.broadcast %c600_i32 : i32 to vector<8x640xi32>
    %9 = arith.cmpi slt, %7, %8 : vector<8x640xi32>
    %cst = arith.constant 0.000000e+00 : f32
    %10 = vector.broadcast %cst : f32 to vector<8x640xf32>
    %11 = arith.select %9, %3, %10 : vector<8x640xi1>, vector<8x640xf32>
    %c0_2 = arith.constant 0 : index
    %c0_3 = arith.constant 0 : index
    %12 = vector.load %arg3[%c0_2, %c0_3] : memref<1x640xf32, #tpu.memory_space<vmem>>, vector<1x640xf32>
    %c0_4 = arith.constant 0 : index
    %c0_5 = arith.constant 0 : index
    %13 = vector.load %arg6[%c0_4, %c0_5] : memref<8x1xf32, #tpu.memory_space<vmem>>, vector<8x1xf32>
    %cst_6 = arith.constant dense<0.000000e+00> : vector<8x1xf32>
    %14 = tpu.matmul %11, %12, %cst_6 {dimension_numbers = #tpu.dot_dimension_numbers<[1], [1], [0], [0], [0, 0, 1, 0], [], []>} : vector<8x640xf32>, vector<1x640xf32>, vector<8x1xf32> -> vector<8x1xf32>
    %15 = arith.addf %13, %14 : vector<8x1xf32>
    %c0_7 = arith.constant 0 : index
    %c0_8 = arith.constant 0 : index
    %16 = vector.load %arg6[%c0_7, %c0_8] : memref<8x1xf32, #tpu.memory_space<vmem>>, vector<8x1xf32>
    tpu.vector_store %arg6[%c0_7, %c0_8], %15 {strides = array<i32>} : memref<8x1xf32, #tpu.memory_space<vmem>>, vector<8x1xf32>,
    %c0_i32_9 = arith.constant 0 : i32
    %17 = arith.cmpi eq, %arg1, %c0_i32_9 : i32
    %18 = arith.extui %17 : i1 to i32
    %c0_i32_10 = arith.constant 0 : i32
    %19 = arith.cmpi ne, %18, %c0_i32_10 : i32
    scf.if %19 {
      %c0_11 = arith.constant 0 : index
      %c0_12 = arith.constant 0 : index
      %20 = vector.load %arg6[%c0_11, %c0_12] : memref<8x1xf32, #tpu.memory_space<vmem>>, vector<8x1xf32>
      %c0_13 = arith.constant 0 : index
      %c0_14 = arith.constant 0 : index
      %21 = memref.load %arg4[%c0_13, %c0_14] : memref<1x1xf32, #tpu.memory_space<smem>>
      %22 = vector.broadcast %21 : f32 to vector<8x1xf32>
      %23 = arith.addf %20, %22 : vector<8x1xf32>
      %c0_15 = arith.constant 0 : index
      %c0_16 = arith.constant 0 : index
      %24 = vector.load %arg5[%c0_15, %c0_16] : memref<8x1xf32, #tpu.memory_space<vmem>>, vector<8x1xf32>
      tpu.vector_store %arg5[%c0_15, %c0_16], %23 {strides = array<i32>} : memref<8x1xf32, #tpu.memory_space<vmem>>, vector<8x1xf32>,
    } else {
    }
    return
  }
  func.func @transform_0(%arg0: i32, %arg1: i32) -> (i32, i32) {
    %c0_i32 = arith.constant 0 : i32
    return %arg0, %arg1 : i32, i32
  }
  func.func @transform_1(%arg0: i32, %arg1: i32) -> (i32, i32) {
    %c0_i32 = arith.constant 0 : i32
    %c0_i32_0 = arith.constant 0 : i32
    return %arg1, %c0_i32 : i32, i32
  }
  func.func @transform_2(%arg0: i32, %arg1: i32) -> (i32, i32) {
    %c0_i32 = arith.constant 0 : i32
    %c0_i32_0 = arith.constant 0 : i32
    %c0_i32_1 = arith.constant 0 : i32
    return %c0_i32, %c0_i32_0 : i32, i32
  }
  func.func @transform_3(%arg0: i32, %arg1: i32) -> (i32, i32) {
    %c0_i32 = arith.constant 0 : i32
    %c0_i32_0 = arith.constant 0 : i32
    return %arg0, %c0_i32 : i32, i32
  }
}

</mosaic_0001>

<llo_original>
// kernel: tpu_custom_call.1
$region0: #{tpu_custom_call.1}
  #allocation0 [shape = 'u32[]', space=smem, size = 0x4, offset = 0x4, fixed_abs, tag = 'smem constant byte address 0x4 - core index']
  #allocation1 [shape = 'u32[72,128]{1,0:T(1,128)}', space=vmem, size = 0x9000, scoped, tag = 'internal scratch']
  #allocation2 [shape = 'f32[8,1]{1,0:T(8,128)}', space=vmem, size = 0x1000, scoped, tag = 'scratch operand']
  #allocation3 [shape = 'f32[1,1]{1,0:T(1,128)S(6)}', space=smem, size = 0x200, scoped, tag = 'scoped memory for tpu_custom_call.1']
  %s0 = inlined_call_operand.hbm [shape: f32[10,600], index: 0, kind: input, shape index: {}]
  %s1 = inlined_call_operand.hbm [shape: f32[1,640], index: 1, kind: input, shape index: {}]
  %s2 = inlined_call_operand.<no memory space> [shape: f32[1,1], index: 2, kind: input, shape index: {}]
  %s3 = inlined_call_operand.vmem [shape: f32[10,1], index: 3, kind: output, shape index: {}]
  %s4 = sld [smem:[#allocation0]]
  $region61: #{tpu_custom_call.1} parent=0
    _
  %s6 = ssub.s32 1, %s4
  %s7 = scalar_select 0, %s6, %s4
  %8 = sst [smem:[#allocation3]] %s2
  $region1: #{tpu_custom_call.1} parent=0
    #allocation4 [shape = 'u8[40960]{0}', space=vmem, size = 0xa000, scoped, tag = 'input window, operand 0']
    #allocation5 [shape = 's32[2]{0}', space=sflag, size = 0x8, scoped, tag = 'scoped memory for tpu_custom_call.1']
    #allocation6 [shape = 'u8[2560]{0}', space=vmem, size = 0xc00, scoped, tag = 'input window, operand 1, single buffered']
    #allocation7 [shape = 's32[1]{0}', space=sflag, size = 0x4, scoped, tag = 'scoped memory for tpu_custom_call.1']
    %9 = vsyncpa [#allocation5], 0
    %s10 = scalar_lea.sflag [#allocation5], 1
    %11 = vsyncpa %s10, 0
    %12 = vsyncpa [#allocation7], 0
    loop: start=0, step=1, limit=4
    $region2: #{tpu_custom_call.1} parent=1 // loop_pre_header
      _
    $region3: #{tpu_custom_call.1} parent=1 // loop_header
      %s14 = sphi 0, %s18
      %p15 = scmp.ge.s32.totalorder %s14, 4
      %s21 = sphi 0, %s33
      %s22 = sphi 0, %s29
      %s23 = sphi 0, %s21
      %s24 = sphi 0, %s22
      %s25 = sphi 0, %s23
      %s26 = sphi 0, %s24
      %s38 = sphi 0, %s40
      %s41 = sphi 0, %s38
      %s42 = sphi 0, %s41
      %s58 = sphi 0, %s42
      %s64 = sphi 0, %s66
      %s67 = sphi 0, %s64
      %s68 = sphi 0, %s67
      %s84 = sphi 0, %s68
      %s88 = sphi 0, %s88
      %s90 = sphi 0, %s88
      %s91 = sphi 0, %s90
      %s105 = sphi 0, %s91
      %s111 = sphi 0, %s113
      %s114 = sphi 0, %s111
      %s115 = sphi 0, %s114
      %s131 = sphi 0, %s115
    $region4: #{tpu_custom_call.1} parent=1 // loop_header_branch
      %17 = sbr.rel (%p15) target = $region8
    $region5: #{tpu_custom_call.1} parent=1 // loop_body
      %s19 = ssub.s32 %s14, 1
      %s20 = ssub.s32 %s14, 2
      %s27 = sadd.s32 1, %s22
      %p28 = scmp.ge.s32.totalorder %s27, 1
      %s29 = scalar_select %p28, 0, %s27
      %s30 = sadd.s32 1, %s21
      %s31 = scalar_select %p28, %s30, %s21
      %p32 = scmp.ge.s32.totalorder %s31, 2
      %s33 = scalar_select %p32, 0, %s31
      %s34 = ssub.s32 %s21, %s33
      %s35 = ssub.s32 %s22, %s29
      %s36 = sor.u32 %s34, %s35
      %p37 = scmp.eq.s32.totalorder %s36, 0
      %s39 = sadd.s32 %s38, 1
      %s40 = scalar_select %p37, %s38, %s39
      %p43 = pneg %p37
      %p44 = scmp.eq.s32.totalorder %s14, 1
      %p45 = por %p43, %p44
      %p46 = scmp.ne.s32.totalorder %s38, %s41
      %p47 = scmp.eq.s32.totalorder %s14, 0
      %p48 = por %p46, %p47
      %p49 = scmp.ne.s32.totalorder %s38, %s41
      %p50 = scmp.eq.s32.totalorder %s19, 1
      %p51 = por %p49, %p50
      %p52 = scmp.ne.s32.totalorder %s41, %s42
      %p53 = scmp.eq.s32.totalorder %s19, 0
      %p54 = por %p52, %p53
      %p55 = scmp.ne.s32.totalorder %s41, %s42
      %p56 = scmp.eq.s32.totalorder %s20, 1
      %p57 = por %p55, %p56
      %p59 = scmp.ne.s32.totalorder %s42, %s58
      %p60 = scmp.eq.s32.totalorder %s20, 0
      %p61 = por %p59, %p60
      %s62 = ssub.s32 %s22, %s29
      %p63 = scmp.eq.s32.totalorder %s62, 0
      %s65 = sadd.s32 %s64, 1
      %s66 = scalar_select %p63, %s64, %s65
      %p69 = pneg %p63
      %p70 = scmp.eq.s32.totalorder %s14, 1
      %p71 = por %p69, %p70
      %p72 = scmp.ne.s32.totalorder %s64, %s67
      %p73 = scmp.eq.s32.totalorder %s14, 0
      %p74 = por %p72, %p73
      %p75 = scmp.ne.s32.totalorder %s64, %s67
      %p76 = scmp.eq.s32.totalorder %s19, 1
      %p77 = por %p75, %p76
      %p78 = scmp.ne.s32.totalorder %s67, %s68
      %p79 = scmp.eq.s32.totalorder %s19, 0
      %p80 = por %p78, %p79
      %p81 = scmp.ne.s32.totalorder %s67, %s68
      %p82 = scmp.eq.s32.totalorder %s20, 1
      %p83 = por %p81, %p82
      %p85 = scmp.ne.s32.totalorder %s68, %s84
      %p86 = scmp.eq.s32.totalorder %s20, 0
      %p87 = por %p85, %p86
      %s89 = sadd.s32 %s88, 1
      %p92 = scmp.eq.s32.totalorder %s14, 1
      %p93 = scmp.ne.s32.totalorder %s88, %s90
      %p94 = scmp.eq.s32.totalorder %s14, 0
      %p95 = por %p93, %p94
      %p96 = scmp.ne.s32.totalorder %s88, %s90
      %p97 = scmp.eq.s32.totalorder %s19, 1
      %p98 = por %p96, %p97
      %p99 = scmp.ne.s32.totalorder %s90, %s91
      %p100 = scmp.eq.s32.totalorder %s19, 0
      %p101 = por %p99, %p100
      %p102 = scmp.ne.s32.totalorder %s90, %s91
      %p103 = scmp.eq.s32.totalorder %s20, 1
      %p104 = por %p102, %p103
      %p106 = scmp.ne.s32.totalorder %s91, %s105
      %p107 = scmp.eq.s32.totalorder %s20, 0
      %p108 = por %p106, %p107
      %s109 = ssub.s32 %s21, %s33
      %p110 = scmp.eq.s32.totalorder %s109, 0
      %s112 = sadd.s32 %s111, 1
      %s113 = scalar_select %p110, %s111, %s112
      %p116 = pneg %p110
      %p117 = scmp.eq.s32.totalorder %s14, 1
      %p118 = por %p116, %p117
      %p119 = scmp.ne.s32.totalorder %s111, %s114
      %p120 = scmp.eq.s32.totalorder %s14, 0
      %p121 = por %p119, %p120
      %p122 = scmp.ne.s32.totalorder %s111, %s114
      %p123 = scmp.eq.s32.totalorder %s19, 1
      %p124 = por %p122, %p123
      %p125 = scmp.ne.s32.totalorder %s114, %s115
      %p126 = scmp.eq.s32.totalorder %s19, 0
      %p127 = por %p125, %p126
      %p128 = scmp.ne.s32.totalorder %s114, %s115
      %p129 = scmp.eq.s32.totalorder %s20, 1
      %p130 = por %p128, %p129
      %p132 = scmp.ne.s32.totalorder %s115, %s131
      %p133 = scmp.eq.s32.totalorder %s20, 0
      %p134 = por %p132, %p133
      %p135 = scmp.le.s32.totalorder 1, %s14
      %p136 = scmp.lt.s32.totalorder %s14, 3
      %p137 = pnand %p135, %p136
      %p138 = pneg %p137
      // Predicated region
      $region9: #{tpu_custom_call.1} parent=5 // pred_check
        _
      $region10: #{tpu_custom_call.1} parent=5 // pred_check_branch
        %140 = sbr.rel (%p137) target = $region12
      $region11: #{tpu_custom_call.1} parent=5 // pred_region
        %s141 = ssub.s32 %s14, 1
        // Predicated region
        $region13: #{tpu_custom_call.1} parent=11 // pred_check
          %p142 = pneg %p80
        $region14: #{tpu_custom_call.1} parent=11 // pred_check_branch
          %144 = sbr.rel (%p142) target = $region16
        $region15: #{tpu_custom_call.1} parent=11 // pred_region
          %146 = vsyncadd [#allocation7], 0
          %s147 = smul.addr %s24, 5
          %s148 = scalar_lea.hbm %s1, %s147
          %s150 = sshll.u32 %s148, 4
          %s151 = int_to_ptr.hbm [resolvable:$true] %s150
          %s152 = sshll.u32 [#allocation6], 4
          %s153 = int_to_ptr.vmem [resolvable:$true] %s152
          %155 = dma.hbm_to_vmem [thread:$0]  %s151, 80, %s153, [#allocation7]
        $region16: #{tpu_custom_call.1} parent=11 // pred_fallthru
          _
        // Predicated region
        $region17: #{tpu_custom_call.1} parent=11 // pred_check
          %p156 = pneg %p101
        $region18: #{tpu_custom_call.1} parent=11 // pred_check_branch
          %158 = sbr.rel (%p156) target = $region20
        $region19: #{tpu_custom_call.1} parent=11 // pred_region
          _
        $region20: #{tpu_custom_call.1} parent=11 // pred_fallthru
          _
      $region12: #{tpu_custom_call.1} parent=5 // pred_fallthru
        _
      %p159 = scmp.lt.s32.totalorder %s14, 2
      // Predicated region
      $region21: #{tpu_custom_call.1} parent=5 // pred_check
        %p160 = pneg %p159
      $region22: #{tpu_custom_call.1} parent=5 // pred_check_branch
        %162 = sbr.rel (%p160) target = $region24
      $region23: #{tpu_custom_call.1} parent=5 // pred_region
        // Predicated region
        $region25: #{tpu_custom_call.1} parent=23 // pred_check
          %p163 = pneg %p48
        $region26: #{tpu_custom_call.1} parent=23 // pred_check_branch
          %165 = sbr.rel (%p163) target = $region28
        $region27: #{tpu_custom_call.1} parent=23 // pred_region
          %s166 = sand.u32 %s38, 1
          %s167 = scalar_lea.sflag [#allocation5], %s166
          %s168 = sand.u32 %s38, 1
          %s169 = smul.addr %s168, 40
          %s170 = scalar_lea.vmem [#allocation4], %s169
          %s171 = smul.u32 5, %s22
          %173 = vsyncadd %s167, 0
          %s174 = smul.addr %s21, 5
          %s175 = sadd.s32 %s171, %s174
          %s176 = smul.addr %s175, 8
          %s177 = scalar_lea.hbm %s0, %s176
          %s179 = sshll.u32 %s177, 4
          %s180 = int_to_ptr.hbm [resolvable:$true] %s179
          %s181 = sshll.u32 %s170, 4
          %s182 = int_to_ptr.vmem [resolvable:$true] %s181
          %184 = dma.hbm_to_vmem [thread:$0]  %s180, 640, %s182, %s167
        $region28: #{tpu_custom_call.1} parent=23 // pred_fallthru
          _
      $region24: #{tpu_custom_call.1} parent=5 // pred_fallthru
        _
      %p185 = scmp.le.s32.totalorder 1, %s14
      %p186 = scmp.lt.s32.totalorder %s14, 3
      %p187 = pnand %p185, %p186
      %p188 = pneg %p187
      // Predicated region
      $region29: #{tpu_custom_call.1} parent=5 // pred_check
        _
      $region30: #{tpu_custom_call.1} parent=5 // pred_check_branch
        %190 = sbr.rel (%p187) target = $region32
      $region31: #{tpu_custom_call.1} parent=5 // pred_region
        %s191 = ssub.s32 %s14, 1
        %s192 = sand.u32 %s41, 1
        %s193 = scalar_lea.sflag [#allocation5], %s192
        %s194 = sand.u32 %s41, 1
        %s195 = smul.addr %s194, 40
        %s196 = scalar_lea.vmem [#allocation4], %s195
        // Predicated region
        $region33: #{tpu_custom_call.1} parent=31 // pred_check
          %p197 = pneg %p54
        $region34: #{tpu_custom_call.1} parent=31 // pred_check_branch
          %199 = sbr.rel (%p197) target = $region36
        $region35: #{tpu_custom_call.1} parent=31 // pred_region
          %201 = dma.done %s193, 640
        $region36: #{tpu_custom_call.1} parent=31 // pred_fallthru
          _
        // Predicated region
        $region37: #{tpu_custom_call.1} parent=31 // pred_check
          %p202 = pneg %p80
        $region38: #{tpu_custom_call.1} parent=31 // pred_check_branch
          %204 = sbr.rel (%p202) target = $region40
        $region39: #{tpu_custom_call.1} parent=31 // pred_region
          %206 = dma.done [#allocation7], 80
        $region40: #{tpu_custom_call.1} parent=31 // pred_fallthru
          _
        %s207 = sand.u32 %s41, 1
        %s208 = scalar_lea.sflag [#allocation5], %s207
        %s209 = sand.u32 %s41, 1
        %s210 = smul.addr %s209, 40
        %s211 = scalar_lea.vmem [#allocation4], %s210
        %p212 = pneg %p54
        %p213 = pneg %p51
        %p214 = pneg %p80
        %p215 = pneg %p77
        %p216 = pneg %p101
        %p217 = pneg %p98
        %p218 = pneg %p127
        %p219 = pneg %p124
        %p220 = scmp.lt.s32.totalorder %s23, 1
        %s221 = scalar_select %p220, %s23, 1
        %s222 = smul.addr %s221, 8
        %s223 = scalar_lea.vmem %s3, %s222
        %s224 = smul.u32 5, %s24
        %p225 = scmp.lt.s32.totalorder %s23, 1
        %s226 = scalar_select %p225, %s23, 1
        %s227 = smul.addr %s226, 8
        %s228 = scalar_lea.vmem %s3, %s227
        %p229 = scmp.eq.s32.totalorder %s24, 0
        // Predicated region
        $region41: #{tpu_custom_call.1} parent=31 // pred_check
          %p230 = pneg %p229
        $region42: #{tpu_custom_call.1} parent=31 // pred_check_branch
          %232 = sbr.rel (%p230) target = $region44
        $region43: #{tpu_custom_call.1} parent=31 // pred_region
          %vm233 = vcmask 7168
          %234 = vst.msk [vmem:[#allocation2] sm:$0xff] %vm233, 0.0
        $region44: #{tpu_custom_call.1} parent=31 // pred_fallthru
          _
        %v235 = vld [vmem:[%s196] sm:$0xff]
        %v236 = vld [vmem:[%s196 + $0x8] sm:$0xff]
        %v237 = vld [vmem:[%s196 + $0x10] sm:$0xff]
        %v238 = vld [vmem:[%s196 + $0x18] sm:$0xff]
        %v239 = vld [vmem:[%s196 + $0x20] sm:$0xff]
        %s240 = smul.u32 %s24, 640
        %v241 = vlaneseq
        %v242 = vand.u32 %v241, 127
        %v243 = vadd.s32 %v242, 128
        %v244 = vadd.s32 %v242, 256
        %v245 = vadd.s32 %v242, 384
        %v246 = vadd.s32 %v242, 512
        %v247 = vstv %s240
        %v248 = vadd.s32 %v247, %v242
        %v249 = vadd.s32 %v247, %v243
        %v250 = vadd.s32 %v247, %v244
        %v251 = vadd.s32 %v247, %v245
        %v252 = vadd.s32 %v247, %v246
        %vm253 = vcmp.lt.s32.totalorder %v248, 600
        %vm254 = vcmp.lt.s32.totalorder %v249, 600
        %vm255 = vcmp.lt.s32.totalorder %v250, 600
        %vm256 = vcmp.lt.s32.totalorder %v251, 600
        %vm257 = vcmp.lt.s32.totalorder %v252, 600
        %v258 = vsel %vm253, %v235, 0.0
        %v259 = vsel %vm254, %v236, 0.0
        %v260 = vsel %vm255, %v237, 0.0
        %v261 = vsel %vm256, %v238, 0.0
        %v262 = vsel %vm257, %v239, 0.0
        %v263 = vld [vmem:[#allocation6] sm:$0x1f]
        %v264 = vld [vmem:[#allocation2] sm:$0xff]
        %v266 = vperm.slane %v263, 0
        %v267 = vperm.slane %v263, 1
        %v268 = vperm.slane %v263, 2
        %v269 = vperm.slane %v263, 3
        %v270 = vperm.slane %v263, 4
        %v276 = vmul.f32 %v258, %v266
        %v277 = vmul.f32 %v259, %v267
        %v278 = vmul.f32 %v260, %v268
        %v279 = vmul.f32 %v261, %v269
        %v280 = vmul.f32 %v262, %v270
        %v281 = vadd.f32 %v276, %v277
        %v282 = vadd.f32 %v281, %v278
        %v283 = vadd.f32 %v282, %v279
        %v284 = vadd.f32 %v283, %v280
        %285 = vadd.xlane.f32.xlu0 %v284
        %v286 = vpop.xlane.xlu0 %285
        %v287 = vadd.f32 %v264, %v286
        %vm288 = vcmask 7168
        %289 = vst.msk [vmem:[#allocation2] sm:$0xff] %vm288, %v287
        // Predicated region
        $region45: #{tpu_custom_call.1} parent=31 // pred_check
          %p290 = pneg %p229
        $region46: #{tpu_custom_call.1} parent=31 // pred_check_branch
          %292 = sbr.rel (%p290) target = $region48
        $region47: #{tpu_custom_call.1} parent=31 // pred_region
          %v293 = vld [vmem:[#allocation2] sm:$0xff]
          %s294 = sld [smem:[#allocation3]]
          %v295 = vstv %s294
          %v296 = vadd.f32 %v293, %v295
          %297 = vst.msk [vmem:[%s228] sm:$0xff] %vm288, %v296
        $region48: #{tpu_custom_call.1} parent=31 // pred_fallthru
          _
        %p298 = scmp.lt.s32.totalorder %s23, 1
        %s299 = scalar_select %p298, %s23, 1
        %s300 = smul.addr %s299, 8
        %s301 = scalar_lea.vmem %s3, %s300
        // Predicated region
        $region49: #{tpu_custom_call.1} parent=31 // pred_check
          %p302 = pneg %p124
        $region50: #{tpu_custom_call.1} parent=31 // pred_check_branch
          %304 = sbr.rel (%p302) target = $region52
        $region51: #{tpu_custom_call.1} parent=31 // pred_region
          _
        $region52: #{tpu_custom_call.1} parent=31 // pred_fallthru
          _
      $region32: #{tpu_custom_call.1} parent=5 // pred_fallthru
        _
      %p305 = scmp.le.s32.totalorder 2, %s14
      // Predicated region
      $region53: #{tpu_custom_call.1} parent=5 // pred_check
        %p306 = pneg %p305
      $region54: #{tpu_custom_call.1} parent=5 // pred_check_branch
        %308 = sbr.rel (%p306) target = $region56
      $region55: #{tpu_custom_call.1} parent=5 // pred_region
        %s309 = ssub.s32 %s14, 2
        // Predicated region
        $region57: #{tpu_custom_call.1} parent=55 // pred_check
          %p310 = pneg %p130
        $region58: #{tpu_custom_call.1} parent=55 // pred_check_branch
          %312 = sbr.rel (%p310) target = $region60
        $region59: #{tpu_custom_call.1} parent=55 // pred_region
          %p313 = scmp.lt.s32.totalorder %s25, 1
          %s314 = scalar_select %p313, %s25, 1
          %s315 = smul.addr %s314, 8
          %s316 = scalar_lea.vmem %s3, %s315
        $region60: #{tpu_custom_call.1} parent=55 // pred_fallthru
          _
      $region56: #{tpu_custom_call.1} parent=5 // pred_fallthru
        _
    $region6: #{tpu_custom_call.1} parent=1 // loop_footer
      %s18 = sadd.s32 1, %s14
    $region7: #{tpu_custom_call.1} parent=1 // loop_footer_branch
      %13 = sbr.rel target = $region3
    $region8: #{tpu_custom_call.1} parent=1 // loop_exit
      _
    %317 = vsyncpa [#allocation5], 1
    %s318 = scalar_lea.sflag [#allocation5], 1
    %319 = vsyncpa %s318, 1
    %320 = vsyncpa [#allocation7], 1

</llo_original>
